<compile_context>
chip_gen: v6e
topology: v6e:2x2x1
jax: 0.10.0
libtpu: 0.0.40
codegen_flags: <defaults>
</compile_context>

<pallas_src>
import math
from functools import partial

import jax
import jax.numpy as jnp
from jax.experimental import pallas as pl
from jax.experimental.pallas import tpu as pltpu


# ---------------------------------------------------------------------------
# Pallas kernels
# ---------------------------------------------------------------------------
def _postnorm_kernel(x_ref, w_ref, g_ref, b_ref, o_ref, *, eps, inv_dim):
    """o = LayerNorm(x @ W) over the true `dim` channels.

    The N (output) axis may be zero-padded up to a lane-dense width; padded
    weight columns / gamma / beta are zero, so sums over the full padded width
    divided by the true dim give the exact LayerNorm statistics.
    """
    y = jnp.dot(x_ref[...], w_ref[...], preferred_element_type=jnp.float32)
    mean = jnp.sum(y, axis=-1, keepdims=True) * inv_dim
    ex2 = jnp.sum(y * y, axis=-1, keepdims=True) * inv_dim
    var = ex2 - mean * mean
    yn = (y - mean) * jax.lax.rsqrt(var + eps)
    o_ref[...] = (yn * g_ref[...] + b_ref[...]).astype(o_ref.dtype)


def _prenorm_kernel(x_ref, w_ref, g_ref, b_ref, o_ref, *, eps, inv_dim,
                    compute_dtype):
    """o = LayerNorm(x) @ W   (LN math in f32, matmul in compute_dtype)."""
    x = x_ref[...].astype(jnp.float32)
    mean = jnp.sum(x, axis=-1, keepdims=True) * inv_dim
    ex2 = jnp.sum(x * x, axis=-1, keepdims=True) * inv_dim
    var = ex2 - mean * mean
    xn = (x - mean) * jax.lax.rsqrt(var + eps) * g_ref[...] + b_ref[...]
    y = jnp.dot(xn.astype(compute_dtype), w_ref[...],
                preferred_element_type=jnp.float32)
    o_ref[...] = y.astype(o_ref.dtype)


# ---------------------------------------------------------------------------
# Wrapper: tiling / padding / pallas_call plumbing
# ---------------------------------------------------------------------------
def _round_up(a, b):
    return (a + b - 1) // b * b


def _choose_block_rows(m_rows, k, n_pad, in_bytes, out_bytes,
                       budget=8 * 1024 * 1024):
    """Row-tile size: big (amortize ~0.35us/step) but conservative for VMEM.

    Budget counts the double-buffered input + output tiles; 8 MiB keeps us far
    under the scoped-VMEM default on every generation (incl. v5e's 16 MiB and
    v7x's smaller physical VMEM), with the resident weight on top.
    """
    per_row = 2 * (k * in_bytes + n_pad * out_bytes)
    tm = max(256, budget // max(per_row, 1))
    tm = min(tm, 4096)
    tm = max(8, (tm // 8) * 8)
    tm = min(tm, _round_up(m_rows, 8))
    return tm


def patch_reduction_pallas(x_flat, weight, gamma, beta, *, postnorm, eps,
                           compute_dtype=jnp.bfloat16, block_rows=None):
    """x_flat: [M, dim]; weight: [dim, dim] (nn.Linear [out, in]); -> [M, dim]."""
    M, dim = x_flat.shape
    out_dtype = x_flat.dtype

    # Lane-dense output slab: pad N up to a multiple of 128 (sliced off below).
    n_pad = _round_up(dim, 128)

    in_bytes = jnp.dtype(compute_dtype).itemsize
    out_bytes = jnp.dtype(out_dtype).itemsize
    tm = block_rows or _choose_block_rows(M, dim, n_pad, in_bytes, out_bytes)
    m_pad = _round_up(M, tm)
    grid = (m_pad // tm,)

    # nn.Linear convention: y = x @ W.T  ->  kernel weight is W.T = [in, out].
    w2d = weight.T.astype(compute_dtype)
    if n_pad != dim:
        w2d = jnp.pad(w2d, ((0, 0), (0, n_pad - dim)))

    x_in = x_flat.astype(compute_dtype)          # halve input DMA bytes
    if m_pad != M:
        x_in = jnp.pad(x_in, ((0, m_pad - M), (0, 0)))

    if postnorm:
        # gamma/beta live on the (padded) output axis; pad with zeros.
        g = jnp.pad(gamma.astype(jnp.float32), (0, n_pad - dim)).reshape(1, n_pad)
        b = jnp.pad(beta.astype(jnp.float32), (0, n_pad - dim)).reshape(1, n_pad)
        gb_spec = pl.BlockSpec((1, n_pad), lambda i: (0, 0))
        kernel = partial(_postnorm_kernel, eps=eps, inv_dim=1.0 / dim)
    else:
        # gamma/beta live on the (unpadded) input axis.
        g = gamma.astype(jnp.float32).reshape(1, dim)
        b = beta.astype(jnp.float32).reshape(1, dim)
        gb_spec = pl.BlockSpec((1, dim), lambda i: (0, 0))
        kernel = partial(_prenorm_kernel, eps=eps, inv_dim=1.0 / dim,
                         compute_dtype=compute_dtype)

    cost = pl.CostEstimate(
        flops=2 * m_pad * dim * n_pad,
        transcendentals=m_pad,
        bytes_accessed=(x_in.size * in_bytes + w2d.size * in_bytes
                        + (g.size + b.size) * 4 + m_pad * n_pad * out_bytes),
    )

    out = pl.pallas_call(
        kernel,
        out_shape=jax.ShapeDtypeStruct((m_pad, n_pad), out_dtype),
        grid=grid,
        in_specs=[
            pl.BlockSpec((tm, dim), lambda i: (i, 0)),      # x row tile
            pl.BlockSpec((dim, n_pad), lambda i: (0, 0)),   # weight, resident
            gb_spec,                                        # gamma, resident
            gb_spec,                                        # beta, resident
        ],
        out_specs=pl.BlockSpec((tm, n_pad), lambda i: (i, 0)),
        compiler_params=pltpu.CompilerParams(
            dimension_semantics=("parallel",)),
        cost_estimate=cost,
    )(x_in, w2d, g, b)

    return out[:M, :dim]


# ---------------------------------------------------------------------------
# PatchReduction1C module (JAX/Pallas)
# ---------------------------------------------------------------------------
class PatchReduction1CPallas:
    def __init__(self, dim, postnorm=True, eps=1e-5,
                 compute_dtype=jnp.bfloat16, key=jax.random.PRNGKey(0)):
        self.dim = dim
        self.postnorm = postnorm
        self.eps = eps
        self.compute_dtype = compute_dtype

        # nn.Linear(dim, dim, bias=False) default init: U(-1/sqrt(dim), 1/sqrt(dim))
        bound = 1.0 / math.sqrt(dim)
        self.weight = jax.random.uniform(key, (dim, dim), jnp.float32,
                                         -bound, bound)       # [out, in]
        # nn.LayerNorm(dim) default init
        self.gamma = jnp.ones((dim,), jnp.float32)
        self.beta = jnp.zeros((dim,), jnp.float32)

    def __call__(self, x, H, W):
        # x: [B, H*W, C]; H, W are unused by the math (API parity with PyTorch)
        B, L, C = x.shape
        assert C == self.dim
        x_flat = x.reshape(B * L, C)                  # free reshape, no copy
        out = patch_reduction_pallas(
            x_flat, self.weight, self.gamma, self.beta,
            postnorm=self.postnorm, eps=self.eps,
            compute_dtype=self.compute_dtype)
        return out.reshape(B, L, C)


# ---------------------------------------------------------------------------
# Reference (plain JAX, mirrors the bf16 matmul rounding) for verification
# ---------------------------------------------------------------------------
def reference_forward(mod: PatchReduction1CPallas, x, H, W):
    cd = mod.compute_dtype
    w_t = mod.weight.T  # [in, out]
    if mod.postnorm:
        y = jnp.dot(x.astype(cd), w_t.astype(cd),
                    preferred_element_type=jnp.float32)
        mean = jnp.mean(y, -1, keepdims=True)
        var = jnp.mean(jnp.square(y - mean), -1, keepdims=True)
        y = (y - mean) * jax.lax.rsqrt(var + mod.eps) * mod.gamma + mod.beta
    else:
        xf = x.astype(cd).astype(jnp.float32)
        mean = jnp.mean(xf, -1, keepdims=True)
        var = jnp.mean(jnp.square(xf - mean), -1, keepdims=True)
        xn = (xf - mean) * jax.lax.rsqrt(var + mod.eps) * mod.gamma + mod.beta
        y = jnp.dot(xn.astype(cd), w_t.astype(cd),
                    preferred_element_type=jnp.float32)
    return y.astype(x.dtype)


# ---------------------------------------------------------------------------
if __name__ == "__main__":
    key = jax.random.PRNGKey(0)
    kx, kw1, kw2 = jax.random.split(key, 3)

    # Small shapes: batch=2, H=W=8 (L=64 tokens), dim=32
    B, H, W, dim = 2, 8, 8, 32
    x = jax.random.normal(kx, (B, H * W, dim), jnp.float32)

    # postnorm=True path (module default): LN(Linear(x))
    mod = PatchReduction1CPallas(dim=dim, postnorm=True, key=kw1)
    out = mod(x, H, W)
    jax.block_until_ready(out)
    ref = reference_forward(mod, x, H, W)
    assert out.shape == (B, H * W, dim), out.shape
    assert jnp.allclose(out, ref, atol=1e-2, rtol=1e-2), \
        float(jnp.max(jnp.abs(out - ref)))

    # postnorm=False path: Linear(LN(x))
    mod_pre = PatchReduction1CPallas(dim=dim, postnorm=False, key=kw2)
    out_pre = mod_pre(x, H, W)
    jax.block_until_ready(out_pre)
    ref_pre = reference_forward(mod_pre, x, H, W)
    assert jnp.allclose(out_pre, ref_pre, atol=1e-2, rtol=1e-2), \
        float(jnp.max(jnp.abs(out_pre - ref_pre)))

    print("KERNEL_OK")
</pallas_src>

<mosaic_0001>
module attributes {stable_mosaic.version = 11 : i64} {
  func.func @_postnorm_kernel(%arg0: i32, %arg1: memref<128x32xbf16, #tpu.memory_space<vmem>>, %arg2: memref<32x128xbf16, #tpu.memory_space<vmem>>, %arg3: memref<1x128xf32, #tpu.memory_space<vmem>>, %arg4: memref<1x128xf32, #tpu.memory_space<vmem>>, %arg5: memref<128x128xf32, #tpu.memory_space<vmem>>) attributes {dimension_semantics = [#tpu.dimension_semantics<parallel>], iteration_bounds = array<i64: 1>, scalar_prefetch = 0 : i64, scratch_operands = 0 : i64, tpu.core_type = #tpu.core_type<tc>, window_params = [{transform_indices = @transform_0, window_bounds = array<i64: 128, 32>}, {pipeline_mode = #tpu.pipeline_mode<synchronous>, transform_indices = @transform_1, window_bounds = array<i64: 32, 128>}, {pipeline_mode = #tpu.pipeline_mode<synchronous>, transform_indices = @transform_2, window_bounds = array<i64: 1, 128>}, {pipeline_mode = #tpu.pipeline_mode<synchronous>, transform_indices = @transform_3, window_bounds = array<i64: 1, 128>}, {transform_indices = @transform_4, window_bounds = array<i64: 128, 128>}]} {
    %c0 = arith.constant 0 : index
    %c0_0 = arith.constant 0 : index
    %0 = vector.load %arg1[%c0, %c0_0] : memref<128x32xbf16, #tpu.memory_space<vmem>>, vector<128x32xbf16>
    %c0_1 = arith.constant 0 : index
    %c0_2 = arith.constant 0 : index
    %1 = vector.load %arg2[%c0_1, %c0_2] : memref<32x128xbf16, #tpu.memory_space<vmem>>, vector<32x128xbf16>
    %cst = arith.constant dense<0.000000e+00> : vector<128x128xf32>
    %2 = tpu.matmul %0, %1, %cst {dimension_numbers = #tpu.dot_dimension_numbers<[1], [0], [0], [1], [0, 0, 1, 1], [], []>} : vector<128x32xbf16>, vector<32x128xbf16>, vector<128x128xf32> -> vector<128x128xf32>
    %cst_3 = arith.constant dense<0.000000e+00> : vector<128xf32>
    %3 = vector.multi_reduction <add>, %2, %cst_3 [1] : vector<128x128xf32> to vector<128xf32>
    %4 = vector.shape_cast %3 : vector<128xf32> to vector<128x1xf32>
    %cst_4 = arith.constant 3.125000e-02 : f32
    %5 = vector.broadcast %cst_4 : f32 to vector<128x1xf32>
    %6 = arith.mulf %4, %5 : vector<128x1xf32>
    %7 = arith.mulf %2, %2 : vector<128x128xf32>
    %cst_5 = arith.constant dense<0.000000e+00> : vector<128xf32>
    %8 = vector.multi_reduction <add>, %7, %cst_5 [1] : vector<128x128xf32> to vector<128xf32>
    %9 = vector.shape_cast %8 : vector<128xf32> to vector<128x1xf32>
    %cst_6 = arith.constant 3.125000e-02 : f32
    %10 = vector.broadcast %cst_6 : f32 to vector<128x1xf32>
    %11 = arith.mulf %9, %10 : vector<128x1xf32>
    %12 = arith.mulf %6, %6 : vector<128x1xf32>
    %13 = arith.subf %11, %12 : vector<128x1xf32>
    %14 = vector.broadcast %6 : vector<128x1xf32> to vector<128x128xf32>
    %15 = arith.subf %2, %14 : vector<128x128xf32>
    %cst_7 = arith.constant 9.99999974E-6 : f32
    %16 = vector.broadcast %cst_7 : f32 to vector<128x1xf32>
    %17 = arith.addf %13, %16 : vector<128x1xf32>
    %18 = math.rsqrt %17 : vector<128x1xf32>
    %19 = vector.broadcast %18 : vector<128x1xf32> to vector<128x128xf32>
    %20 = arith.mulf %15, %19 : vector<128x128xf32>
    %c0_8 = arith.constant 0 : index
    %c0_9 = arith.constant 0 : index
    %21 = vector.load %arg3[%c0_8, %c0_9] : memref<1x128xf32, #tpu.memory_space<vmem>>, vector<1x128xf32>
    %22 = vector.broadcast %21 : vector<1x128xf32> to vector<128x128xf32>
    %23 = arith.mulf %20, %22 : vector<128x128xf32>
    %c0_10 = arith.constant 0 : index
    %c0_11 = arith.constant 0 : index
    %24 = vector.load %arg4[%c0_10, %c0_11] : memref<1x128xf32, #tpu.memory_space<vmem>>, vector<1x128xf32>
    %25 = vector.broadcast %24 : vector<1x128xf32> to vector<128x128xf32>
    %26 = arith.addf %23, %25 : vector<128x128xf32>
    %c0_12 = arith.constant 0 : index
    %c0_13 = arith.constant 0 : index
    %27 = vector.load %arg5[%c0_12, %c0_13] : memref<128x128xf32, #tpu.memory_space<vmem>>, vector<128x128xf32>
    tpu.vector_store %arg5[%c0_12, %c0_13], %26 {strides = array<i32>} : memref<128x128xf32, #tpu.memory_space<vmem>>, vector<128x128xf32>,
    return
  }
  func.func @transform_0(%arg0: i32) -> (i32, i32) {
    %c0_i32 = arith.constant 0 : i32
    %c0_i32_0 = arith.constant 0 : i32
    return %arg0, %c0_i32 : i32, i32
  }
  func.func @transform_1(%arg0: i32) -> (i32, i32) {
    %c0_i32 = arith.constant 0 : i32
    %c0_i32_0 = arith.constant 0 : i32
    %c0_i32_1 = arith.constant 0 : i32
    return %c0_i32, %c0_i32_0 : i32, i32
  }
  func.func @transform_2(%arg0: i32) -> (i32, i32) {
    %c0_i32 = arith.constant 0 : i32
    %c0_i32_0 = arith.constant 0 : i32
    %c0_i32_1 = arith.constant 0 : i32
    return %c0_i32, %c0_i32_0 : i32, i32
  }
  func.func @transform_3(%arg0: i32) -> (i32, i32) {
    %c0_i32 = arith.constant 0 : i32
    %c0_i32_0 = arith.constant 0 : i32
    %c0_i32_1 = arith.constant 0 : i32
    return %c0_i32, %c0_i32_0 : i32, i32
  }
  func.func @transform_4(%arg0: i32) -> (i32, i32) {
    %c0_i32 = arith.constant 0 : i32
    %c0_i32_0 = arith.constant 0 : i32
    return %arg0, %c0_i32 : i32, i32
  }
}

</mosaic_0001>

<llo_original>
// kernel: tpu_custom_call.1
$region0: #{tpu_custom_call.1}
  #allocation0 [shape = 'u32[]', space=smem, size = 0x4, offset = 0x4, fixed_abs, tag = 'smem constant byte address 0x4 - core index']
  #allocation1 [shape = 'u32[144,128]{1,0:T(1,128)}', space=vmem, size = 0x12000, scoped, tag = 'internal scratch']
  %s0 = inlined_call_operand.vmem [shape: bf16[128,32], index: 0, kind: input, shape index: {}]
  %s1 = inlined_call_operand.vmem [shape: bf16[32,128], index: 1, kind: input, shape index: {}]
  %s2 = inlined_call_operand.vmem [shape: f32[1,128], index: 2, kind: input, shape index: {}]
  %s3 = inlined_call_operand.vmem [shape: f32[1,128], index: 3, kind: input, shape index: {}]
  %s4 = inlined_call_operand.hbm [shape: f32[128,128], index: 4, kind: output, shape index: {}]
  %s5 = sld [smem:[#allocation0]]
  $region26: #{tpu_custom_call.1} parent=0
    _
  %s7 = ssub.s32 1, %s5
  %s8 = scalar_select 0, %s7, %s5
  $region1: #{tpu_custom_call.1} parent=0
    #allocation2 [shape = 'u8[65536]{0}', space=vmem, size = 0x10000, scoped, tag = 'output window, operand 0, single buffered']
    #allocation3 [shape = 's32[1]{0}', space=sflag, size = 0x4, scoped, tag = 'scoped memory for tpu_custom_call.1']
    %9 = vsyncpa [#allocation3], 0
    // Predicated region
    $region2: #{tpu_custom_call.1} parent=1 // pred_check
      _
    $region3: #{tpu_custom_call.1} parent=1 // pred_check_branch
      %11 = sbr.rel (0) target = $region5
    $region4: #{tpu_custom_call.1} parent=1 // pred_region
      _
    $region5: #{tpu_custom_call.1} parent=1 // pred_fallthru
      _
    // Predicated region
    $region6: #{tpu_custom_call.1} parent=1 // pred_check
      _
    $region7: #{tpu_custom_call.1} parent=1 // pred_check_branch
      %13 = sbr.rel (0) target = $region9
    $region8: #{tpu_custom_call.1} parent=1 // pred_region
      _
    $region9: #{tpu_custom_call.1} parent=1 // pred_fallthru
      _
    // Predicated region
    $region10: #{tpu_custom_call.1} parent=1 // pred_check
      _
    $region11: #{tpu_custom_call.1} parent=1 // pred_check_branch
      %15 = sbr.rel (0) target = $region13
    $region12: #{tpu_custom_call.1} parent=1 // pred_region
      _
    $region13: #{tpu_custom_call.1} parent=1 // pred_fallthru
      _
    // Predicated region
    $region14: #{tpu_custom_call.1} parent=1 // pred_check
      _
    $region15: #{tpu_custom_call.1} parent=1 // pred_check_branch
      %17 = sbr.rel (0) target = $region17
    $region16: #{tpu_custom_call.1} parent=1 // pred_region
      _
    $region17: #{tpu_custom_call.1} parent=1 // pred_fallthru
      _
    %v19 = vld [vmem:[%s0] sm:$0xf]
    %v20 = vld [vmem:[%s0 + $0x4] sm:$0xf]
    %v21 = vld [vmem:[%s0 + $0x8] sm:$0xf]
    %v22 = vld [vmem:[%s0 + $0xc] sm:$0xf]
    %v23 = vld [vmem:[%s0 + $0x10] sm:$0xf]
    %v24 = vld [vmem:[%s0 + $0x14] sm:$0xf]
    %v25 = vld [vmem:[%s0 + $0x18] sm:$0xf]
    %v26 = vld [vmem:[%s0 + $0x1c] sm:$0xf]
    %v27 = vld [vmem:[%s0 + $0x20] sm:$0xf]
    %v28 = vld [vmem:[%s0 + $0x24] sm:$0xf]
    %v29 = vld [vmem:[%s0 + $0x28] sm:$0xf]
    %v30 = vld [vmem:[%s0 + $0x2c] sm:$0xf]
    %v31 = vld [vmem:[%s0 + $0x30] sm:$0xf]
    %v32 = vld [vmem:[%s0 + $0x34] sm:$0xf]
    %v33 = vld [vmem:[%s0 + $0x38] sm:$0xf]
    %v34 = vld [vmem:[%s0 + $0x3c] sm:$0xf]
    %v35 = vld [vmem:[%s1] sm:$0xf]
    %v36 = vld [vmem:[%s1 + $0x4] sm:$0xf]
    %v37 = vld [vmem:[%s1 + $0x8] sm:$0xf]
    %v38 = vld [vmem:[%s1 + $0xc] sm:$0xf]
    %v55 = vunpack.c.l.b16 %v19
    %v56 = vunpack.c.l.b16 %v20
    %v57 = vunpack.c.l.b16 %v21
    %v58 = vunpack.c.l.b16 %v22
    %v59 = vunpack.c.l.b16 %v23
    %v60 = vunpack.c.l.b16 %v24
    %v61 = vunpack.c.l.b16 %v25
    %v62 = vunpack.c.l.b16 %v26
    %v63 = vunpack.c.l.b16 %v27
    %v64 = vunpack.c.l.b16 %v28
    %v65 = vunpack.c.l.b16 %v29
    %v66 = vunpack.c.l.b16 %v30
    %v67 = vunpack.c.l.b16 %v31
    %v68 = vunpack.c.l.b16 %v32
    %v69 = vunpack.c.l.b16 %v33
    %v70 = vunpack.c.l.b16 %v34
    %v71 = vpack.c.b16 %v56, %v55
    %v72 = vpack.c.b16 %v58, %v57
    %v73 = vpack.c.b16 %v60, %v59
    %v74 = vpack.c.b16 %v62, %v61
    %v75 = vpack.c.b16 %v64, %v63
    %v76 = vpack.c.b16 %v66, %v65
    %v77 = vpack.c.b16 %v68, %v67
    %v78 = vpack.c.b16 %v70, %v69
    %v83 = vunpack.c.l.b16 %v35
    %v84 = vunpack.c.l.b16 %v36
    %v85 = vunpack.c.l.b16 %v37
    %v86 = vunpack.c.l.b16 %v38
    %v87 = vpack.c.b16 %v84, %v83
    %v88 = vpack.c.b16 %v86, %v85
    %vm91 = vcmask 261120
    %v93 = vsel %vm91, %v71, 0
    %v96 = vsel %vm91, %v72, 0
    %v99 = vsel %vm91, %v73, 0
    %v102 = vsel %vm91, %v74, 0
    %v105 = vsel %vm91, %v75, 0
    %v108 = vsel %vm91, %v76, 0
    %v111 = vsel %vm91, %v77, 0
    %v114 = vsel %vm91, %v78, 0
    %116 = vmatprep.subr.bf16.mxu0 0
    %117 = vmatpush1.bf16.msra.mxu0 0
    %118 = vmatprep.subr.bf16.mxu0 0
    %119 = vmatpush1.bf16.msra.mxu0 0
    %120 = vmatprep.subr.bf16.mxu0 0
    %121 = vmatpush1.bf16.msra.mxu0 0
    %122 = vmatprep.subr.bf16.mxu0 0
    %123 = vmatpush1.bf16.msra.mxu0 0
    %124 = vmatprep.subr.bf16.mxu0 0
    %125 = vmatpush1.bf16.msra.mxu0 0
    %126 = vmatprep.subr.bf16.mxu0 0
    %127 = vmatpush1.bf16.msra.mxu0 0
    %128 = vmatprep.subr.bf16.mxu0 0
    %129 = vmatpush1.bf16.msra.mxu0 %v88
    %130 = vmatprep.subr.bf16.mxu0 0
    %131 = vmatpush1.bf16.msra.mxu0 %v87
    %132 = vmatprep.subr.bf16.mxu0 0
    %133 = vmatpush2.bf16.msra.mxu0 0
    %134 = vmatprep.subr.bf16.mxu0 0
    %135 = vmatpush2.bf16.msra.mxu0 0
    %136 = vmatprep.subr.bf16.mxu0 0
    %137 = vmatpush2.bf16.msra.mxu0 0
    %138 = vmatprep.subr.bf16.mxu0 0
    %139 = vmatpush2.bf16.msra.mxu0 0
    %140 = vmatprep.subr.bf16.mxu0 0
    %141 = vmatpush2.bf16.msra.mxu0 0
    %142 = vmatprep.subr.bf16.mxu0 0
    %143 = vmatpush2.bf16.msra.mxu0 0
    %144 = vmatprep.subr.bf16.mxu0 0
    %145 = vmatpush2.bf16.msra.mxu0 0
    %146 = vmatprep.subr.bf16.mxu0 0
    %147 = vmatpush2.bf16.msra.mxu0 0
    %148 = vmatprep.mubr.bf16.mxu0 0
    %149 = vmatmul.mubr.bf16.gmra.mxu0 %v93
    %v150 = vpop.f32.mrf.mxu0
    %v151 = vadd.f32 0.0, %v150
    %v152 = vpop.f32.mrf.mxu0
    %v153 = vpop.f32.mrf.mxu0
    %v154 = vadd.f32 0.0, %v153
    %v155 = vpop.f32.mrf.mxu0
    %156 = vmatprep.mubr.bf16.mxu0 0
    %157 = vmatmul.mubr.bf16.gmra.mxu0 %v96
    %v158 = vpop.f32.mrf.mxu0
    %v159 = vadd.f32 0.0, %v158
    %v160 = vpop.f32.mrf.mxu0
    %v161 = vpop.f32.mrf.mxu0
    %v162 = vadd.f32 0.0, %v161
    %v163 = vpop.f32.mrf.mxu0
    %164 = vmatprep.mubr.bf16.mxu0 0
    %165 = vmatmul.mubr.bf16.gmra.mxu0 %v99
    %v166 = vpop.f32.mrf.mxu0
    %v167 = vadd.f32 0.0, %v166
    %v168 = vpop.f32.mrf.mxu0
    %v169 = vpop.f32.mrf.mxu0
    %v170 = vadd.f32 0.0, %v169
    %v171 = vpop.f32.mrf.mxu0
    %172 = vmatprep.mubr.bf16.mxu0 0
    %173 = vmatmul.mubr.bf16.gmra.mxu0 %v102
    %v174 = vpop.f32.mrf.mxu0
    %v175 = vadd.f32 0.0, %v174
    %v176 = vpop.f32.mrf.mxu0
    %v177 = vpop.f32.mrf.mxu0
    %v178 = vadd.f32 0.0, %v177
    %v179 = vpop.f32.mrf.mxu0
    %180 = vmatprep.mubr.bf16.mxu0 0
    %181 = vmatmul.mubr.bf16.gmra.mxu0 %v105
    %v182 = vpop.f32.mrf.mxu0
    %v183 = vadd.f32 0.0, %v182
    %v184 = vpop.f32.mrf.mxu0
    %v185 = vpop.f32.mrf.mxu0
    %v186 = vadd.f32 0.0, %v185
    %v187 = vpop.f32.mrf.mxu0
    %188 = vmatprep.mubr.bf16.mxu0 0
    %189 = vmatmul.mubr.bf16.gmra.mxu0 %v108
    %v190 = vpop.f32.mrf.mxu0
    %v191 = vadd.f32 0.0, %v190
    %v192 = vpop.f32.mrf.mxu0
    %v193 = vpop.f32.mrf.mxu0
    %v194 = vadd.f32 0.0, %v193
    %v195 = vpop.f32.mrf.mxu0
    %196 = vmatprep.mubr.bf16.mxu0 0
    %197 = vmatmul.mubr.bf16.gmra.mxu0 %v111
    %v198 = vpop.f32.mrf.mxu0
    %v199 = vadd.f32 0.0, %v198
    %v200 = vpop.f32.mrf.mxu0
    %v201 = vpop.f32.mrf.mxu0
    %v202 = vadd.f32 0.0, %v201
    %v203 = vpop.f32.mrf.mxu0
    %204 = vmatprep.mubr.bf16.mxu0 0
    %205 = vmatmul.mubr.bf16.gmra.mxu0 %v114
    %v206 = vpop.f32.mrf.mxu0
    %v207 = vadd.f32 0.0, %v206
    %v208 = vpop.f32.mrf.mxu0
    %v209 = vpop.f32.mrf.mxu0
    %v210 = vadd.f32 0.0, %v209
    %v211 = vpop.f32.mrf.mxu0
    %212 = vdwg.mxu0
    %213 = vadd.xlane.f32.xlu0 %v151
    %v214 = vpop.xlane.xlu0 %213
    %215 = vadd.xlane.f32.xlu0 %v154
    %v216 = vpop.xlane.xlu0 %215
    %217 = vadd.xlane.f32.xlu0 %v159
    %v218 = vpop.xlane.xlu0 %217
    %219 = vadd.xlane.f32.xlu0 %v162
    %v220 = vpop.xlane.xlu0 %219
    %221 = vadd.xlane.f32.xlu0 %v167
    %v222 = vpop.xlane.xlu0 %221
    %223 = vadd.xlane.f32.xlu0 %v170
    %v224 = vpop.xlane.xlu0 %223
    %225 = vadd.xlane.f32.xlu0 %v175
    %v226 = vpop.xlane.xlu0 %225
    %227 = vadd.xlane.f32.xlu0 %v178
    %v228 = vpop.xlane.xlu0 %227
    %229 = vadd.xlane.f32.xlu0 %v183
    %v230 = vpop.xlane.xlu0 %229
    %231 = vadd.xlane.f32.xlu0 %v186
    %v232 = vpop.xlane.xlu0 %231
    %233 = vadd.xlane.f32.xlu0 %v191
    %v234 = vpop.xlane.xlu0 %233
    %235 = vadd.xlane.f32.xlu0 %v194
    %v236 = vpop.xlane.xlu0 %235
    %237 = vadd.xlane.f32.xlu0 %v199
    %v238 = vpop.xlane.xlu0 %237
    %239 = vadd.xlane.f32.xlu0 %v202
    %v240 = vpop.xlane.xlu0 %239
    %241 = vadd.xlane.f32.xlu0 %v207
    %v242 = vpop.xlane.xlu0 %241
    %243 = vadd.xlane.f32.xlu0 %v210
    %v244 = vpop.xlane.xlu0 %243
    %v245 = vmul.f32 %v214, 0.03125
    %v246 = vmul.f32 %v216, 0.03125
    %v247 = vmul.f32 %v218, 0.03125
    %v248 = vmul.f32 %v220, 0.03125
    %v249 = vmul.f32 %v222, 0.03125
    %v250 = vmul.f32 %v224, 0.03125
    %v251 = vmul.f32 %v226, 0.03125
    %v252 = vmul.f32 %v228, 0.03125
    %v253 = vmul.f32 %v230, 0.03125
    %v254 = vmul.f32 %v232, 0.03125
    %v255 = vmul.f32 %v234, 0.03125
    %v256 = vmul.f32 %v236, 0.03125
    %v257 = vmul.f32 %v238, 0.03125
    %v258 = vmul.f32 %v240, 0.03125
    %v259 = vmul.f32 %v242, 0.03125
    %v260 = vmul.f32 %v244, 0.03125
    %v261 = vmul.f32 %v151, %v151
    %v262 = vmul.f32 %v154, %v154
    %v263 = vmul.f32 %v159, %v159
    %v264 = vmul.f32 %v162, %v162
    %v265 = vmul.f32 %v167, %v167
    %v266 = vmul.f32 %v170, %v170
    %v267 = vmul.f32 %v175, %v175
    %v268 = vmul.f32 %v178, %v178
    %v269 = vmul.f32 %v183, %v183
    %v270 = vmul.f32 %v186, %v186
    %v271 = vmul.f32 %v191, %v191
    %v272 = vmul.f32 %v194, %v194
    %v273 = vmul.f32 %v199, %v199
    %v274 = vmul.f32 %v202, %v202
    %v275 = vmul.f32 %v207, %v207
    %v276 = vmul.f32 %v210, %v210
    %277 = vadd.xlane.f32.xlu0 %v261
    %v278 = vpop.xlane.xlu0 %277
    %279 = vadd.xlane.f32.xlu0 %v262
    %v280 = vpop.xlane.xlu0 %279
    %281 = vadd.xlane.f32.xlu0 %v263
    %v282 = vpop.xlane.xlu0 %281
    %283 = vadd.xlane.f32.xlu0 %v264
    %v284 = vpop.xlane.xlu0 %283
    %285 = vadd.xlane.f32.xlu0 %v265
    %v286 = vpop.xlane.xlu0 %285
    %287 = vadd.xlane.f32.xlu0 %v266
    %v288 = vpop.xlane.xlu0 %287
    %289 = vadd.xlane.f32.xlu0 %v267
    %v290 = vpop.xlane.xlu0 %289
    %291 = vadd.xlane.f32.xlu0 %v268
    %v292 = vpop.xlane.xlu0 %291
    %293 = vadd.xlane.f32.xlu0 %v269
    %v294 = vpop.xlane.xlu0 %293
    %295 = vadd.xlane.f32.xlu0 %v270
    %v296 = vpop.xlane.xlu0 %295
    %297 = vadd.xlane.f32.xlu0 %v271
    %v298 = vpop.xlane.xlu0 %297
    %299 = vadd.xlane.f32.xlu0 %v272
    %v300 = vpop.xlane.xlu0 %299
    %301 = vadd.xlane.f32.xlu0 %v273
    %v302 = vpop.xlane.xlu0 %301
    %303 = vadd.xlane.f32.xlu0 %v274
    %v304 = vpop.xlane.xlu0 %303
    %305 = vadd.xlane.f32.xlu0 %v275
    %v306 = vpop.xlane.xlu0 %305
    %307 = vadd.xlane.f32.xlu0 %v276
    %v308 = vpop.xlane.xlu0 %307
    %v309 = vmul.f32 %v278, 0.03125
    %v310 = vmul.f32 %v280, 0.03125
    %v311 = vmul.f32 %v282, 0.03125
    %v312 = vmul.f32 %v284, 0.03125
    %v313 = vmul.f32 %v286, 0.03125
    %v314 = vmul.f32 %v288, 0.03125
    %v315 = vmul.f32 %v290, 0.03125
    %v316 = vmul.f32 %v292, 0.03125
    %v317 = vmul.f32 %v294, 0.03125
    %v318 = vmul.f32 %v296, 0.03125
    %v319 = vmul.f32 %v298, 0.03125
    %v320 = vmul.f32 %v300, 0.03125
    %v321 = vmul.f32 %v302, 0.03125
    %v322 = vmul.f32 %v304, 0.03125
    %v323 = vmul.f32 %v306, 0.03125
    %v324 = vmul.f32 %v308, 0.03125
    %v325 = vmul.f32 %v245, %v245
    %v326 = vmul.f32 %v246, %v246
    %v327 = vmul.f32 %v247, %v247
    %v328 = vmul.f32 %v248, %v248
    %v329 = vmul.f32 %v249, %v249
    %v330 = vmul.f32 %v250, %v250
    %v331 = vmul.f32 %v251, %v251
    %v332 = vmul.f32 %v252, %v252
    %v333 = vmul.f32 %v253, %v253
    %v334 = vmul.f32 %v254, %v254
    %v335 = vmul.f32 %v255, %v255
    %v336 = vmul.f32 %v256, %v256
    %v337 = vmul.f32 %v257, %v257
    %v338 = vmul.f32 %v258, %v258
    %v339 = vmul.f32 %v259, %v259
    %v340 = vmul.f32 %v260, %v260
    %v341 = vsub.f32 %v309, %v325
    %v342 = vsub.f32 %v310, %v326
    %v343 = vsub.f32 %v311, %v327
    %v344 = vsub.f32 %v312, %v328
    %v345 = vsub.f32 %v313, %v329
    %v346 = vsub.f32 %v314, %v330
    %v347 = vsub.f32 %v315, %v331
    %v348 = vsub.f32 %v316, %v332
    %v349 = vsub.f32 %v317, %v333
    %v350 = vsub.f32 %v318, %v334
    %v351 = vsub.f32 %v319, %v335
    %v352 = vsub.f32 %v320, %v336
    %v353 = vsub.f32 %v321, %v337
    %v354 = vsub.f32 %v322, %v338
    %v355 = vsub.f32 %v323, %v339
    %v356 = vsub.f32 %v324, %v340
    %v357 = vsub.f32 %v151, %v245
    %v358 = vsub.f32 %v154, %v246
    %v359 = vsub.f32 %v159, %v247
    %v360 = vsub.f32 %v162, %v248
    %v361 = vsub.f32 %v167, %v249
    %v362 = vsub.f32 %v170, %v250
    %v363 = vsub.f32 %v175, %v251
    %v364 = vsub.f32 %v178, %v252
    %v365 = vsub.f32 %v183, %v253
    %v366 = vsub.f32 %v186, %v254
    %v367 = vsub.f32 %v191, %v255
    %v368 = vsub.f32 %v194, %v256
    %v369 = vsub.f32 %v199, %v257
    %v370 = vsub.f32 %v202, %v258
    %v371 = vsub.f32 %v207, %v259
    %v372 = vsub.f32 %v210, %v260
    %v373 = vadd.f32 %v341, 1e-05
    %v374 = vadd.f32 %v342, 1e-05
    %v375 = vadd.f32 %v343, 1e-05
    %v376 = vadd.f32 %v344, 1e-05
    %v377 = vadd.f32 %v345, 1e-05
    %v378 = vadd.f32 %v346, 1e-05
    %v379 = vadd.f32 %v347, 1e-05
    %v380 = vadd.f32 %v348, 1e-05
    %v381 = vadd.f32 %v349, 1e-05
    %v382 = vadd.f32 %v350, 1e-05
    %v383 = vadd.f32 %v351, 1e-05
    %v384 = vadd.f32 %v352, 1e-05
    %v385 = vadd.f32 %v353, 1e-05
    %v386 = vadd.f32 %v354, 1e-05
    %v387 = vadd.f32 %v355, 1e-05
    %v388 = vadd.f32 %v356, 1e-05
    %v389 = vrsqrt.pop %v373
    %v390 = vrsqrt.pop %v374
    %v391 = vrsqrt.pop %v375
    %v392 = vrsqrt.pop %v376
    %v393 = vrsqrt.pop %v377
    %v394 = vrsqrt.pop %v378
    %v395 = vrsqrt.pop %v379
    %v396 = vrsqrt.pop %v380
    %v397 = vrsqrt.pop %v381
    %v398 = vrsqrt.pop %v382
    %v399 = vrsqrt.pop %v383
    %v400 = vrsqrt.pop %v384
    %v401 = vrsqrt.pop %v385
    %v402 = vrsqrt.pop %v386
    %v403 = vrsqrt.pop %v387
    %v404 = vrsqrt.pop %v388
    %v405 = vmul.f32 %v357, %v389
    %v406 = vmul.f32 %v358, %v390
    %v407 = vmul.f32 %v359, %v391
    %v408 = vmul.f32 %v360, %v392
    %v409 = vmul.f32 %v361, %v393
    %v410 = vmul.f32 %v362, %v394
    %v411 = vmul.f32 %v363, %v395
    %v412 = vmul.f32 %v364, %v396
    %v413 = vmul.f32 %v365, %v397
    %v414 = vmul.f32 %v366, %v398
    %v415 = vmul.f32 %v367, %v399
    %v416 = vmul.f32 %v368, %v400
    %v417 = vmul.f32 %v369, %v401
    %v418 = vmul.f32 %v370, %v402
    %v419 = vmul.f32 %v371, %v403
    %v420 = vmul.f32 %v372, %v404
    %v421 = vld [vmem:[%s2] sm:$0x1]
    %v423 = vlaneseq
    %v424 = vshrl.u32 %v423, 7
    %v425 = vsub.s32 0, %v424
    %v426 = vrot.slane %v421, %v425
    %v428 = vmul.f32 %v405, %v426
    %v429 = vmul.f32 %v406, %v426
    %v430 = vmul.f32 %v407, %v426
    %v431 = vmul.f32 %v408, %v426
    %v432 = vmul.f32 %v409, %v426
    %v433 = vmul.f32 %v410, %v426
    %v434 = vmul.f32 %v411, %v426
    %v435 = vmul.f32 %v412, %v426
    %v436 = vmul.f32 %v413, %v426
    %v437 = vmul.f32 %v414, %v426
    %v438 = vmul.f32 %v415, %v426
    %v439 = vmul.f32 %v416, %v426
    %v440 = vmul.f32 %v417, %v426
    %v441 = vmul.f32 %v418, %v426
    %v442 = vmul.f32 %v419, %v426
    %v443 = vmul.f32 %v420, %v426
    %v444 = vld [vmem:[%s3] sm:$0x1]
    %v446 = vlaneseq
    %v447 = vshrl.u32 %v446, 7
    %v448 = vsub.s32 0, %v447
    %v449 = vrot.slane %v444, %v448
    %v451 = vadd.f32 %v428, %v449
    %v452 = vadd.f32 %v429, %v449
    %v453 = vadd.f32 %v430, %v449
    %v454 = vadd.f32 %v431, %v449
    %v455 = vadd.f32 %v432, %v449
    %v456 = vadd.f32 %v433, %v449
    %v457 = vadd.f32 %v434, %v449
    %v458 = vadd.f32 %v435, %v449
    %v459 = vadd.f32 %v436, %v449
    %v460 = vadd.f32 %v437, %v449
    %v461 = vadd.f32 %v438, %v449
    %v462 = vadd.f32 %v439, %v449
    %v463 = vadd.f32 %v440, %v449
    %v464 = vadd.f32 %v441, %v449
    %v465 = vadd.f32 %v442, %v449
    %v466 = vadd.f32 %v443, %v449
    %467 = vst [vmem:[#allocation2] sm:$0xff] %v451
    %468 = vst [vmem:[#allocation2 + $0x8] sm:$0xff] %v452
    %469 = vst [vmem:[#allocation2 + $0x10] sm:$0xff] %v453
    %470 = vst [vmem:[#allocation2 + $0x18] sm:$0xff] %v454
    %471 = vst [vmem:[#allocation2 + $0x20] sm:$0xff] %v455
    %472 = vst [vmem:[#allocation2 + $0x28] sm:$0xff] %v456
    %473 = vst [vmem:[#allocation2 + $0x30] sm:$0xff] %v457
    %474 = vst [vmem:[#allocation2 + $0x38] sm:$0xff] %v458
    %475 = vst [vmem:[#allocation2 + $0x40] sm:$0xff] %v459
    %476 = vst [vmem:[#allocation2 + $0x48] sm:$0xff] %v460
    %477 = vst [vmem:[#allocation2 + $0x50] sm:$0xff] %v461
    %478 = vst [vmem:[#allocation2 + $0x58] sm:$0xff] %v462
    %479 = vst [vmem:[#allocation2 + $0x60] sm:$0xff] %v463
    %480 = vst [vmem:[#allocation2 + $0x68] sm:$0xff] %v464
    %481 = vst [vmem:[#allocation2 + $0x70] sm:$0xff] %v465
    %482 = vst [vmem:[#allocation2 + $0x78] sm:$0xff] %v466
    // Predicated region
    $region18: #{tpu_custom_call.1} parent=1 // pred_check
      _
    $region19: #{tpu_custom_call.1} parent=1 // pred_check_branch
      %484 = sbr.rel (0) target = $region21
    $region20: #{tpu_custom_call.1} parent=1 // pred_region
      %s486 = ssub.s32 2048, 2048
      %487 = vsyncadd [#allocation3], %s486
      %s488 = sshll.u32 [#allocation2], 4
      %s489 = int_to_ptr.vmem [resolvable:$true] %s488
      %494 = dma.vmem_to_hbm [thread:$0]  %s489, 2048, %s4, [#allocation3], 128, 128, 8
    $region21: #{tpu_custom_call.1} parent=1 // pred_fallthru
      _
    // Predicated region
    $region22: #{tpu_custom_call.1} parent=1 // pred_check
      _
    $region23: #{tpu_custom_call.1} parent=1 // pred_check_branch
      %496 = sbr.rel (0) target = $region25
    $region24: #{tpu_custom_call.1} parent=1 // pred_region
      %497 = dma.done [#allocation3], 2048
    $region25: #{tpu_custom_call.1} parent=1 // pred_fallthru
      _
    %498 = vsyncpa [#allocation3], 1

</llo_original>
